<compile_context>
chip_gen: v5e
topology: v5e:2x2
jax: 0.10.0
libtpu: 0.0.40
codegen_flags: <defaults>
</compile_context>

<pallas_src>
import numpy as np
import jax
import jax.numpy as jnp
from jax.experimental import pallas as pl
from jax.experimental.pallas import tpu as pltpu


def build_constants(num_fiducial, I_r_size, eps=1e-6):
    """Host-side (numpy, float64) data-independent constants, mirroring
    build_C_paddle / build_P_paddle / build_inv_delta_C_paddle / build_P_hat_paddle.
    Returns (inv_delta_C_f32, P_hat_f32, M_T_f32) where M = P_hat @ inv_delta_C."""
    F = num_fiducial
    I_r_h, I_r_w = I_r_size

    # build_C_paddle
    ctrl_x = np.linspace(-1.0, 1.0, F // 2, dtype=np.float64)
    top = np.stack([ctrl_x, -np.ones(F // 2, dtype=np.float64)], axis=1)
    bot = np.stack([ctrl_x, np.ones(F // 2, dtype=np.float64)], axis=1)
    C = np.concatenate([top, bot], axis=0)                                     # (F, 2)

    # build_P_paddle
    gx = (np.arange(-I_r_w, I_r_w, 2, dtype=np.float64) + 1.0) / float(I_r_w)  # (W,)
    gy = (np.arange(-I_r_h, I_r_h, 2, dtype=np.float64) + 1.0) / float(I_r_h)  # (H,)
    P = np.stack(np.meshgrid(gx, gy, indexing="ij"), axis=2)                   # (W, H, 2)
    P = np.transpose(P, (1, 0, 2)).reshape(-1, 2)                              # (H*W, 2)

    # build_inv_delta_C_paddle
    hat_eye = np.eye(F, dtype=np.float64)
    hat_C = np.linalg.norm(C[None, :, :] - C[:, None, :], axis=2) + hat_eye
    hat_C = (hat_C ** 2) * np.log(hat_C)
    delta_C = np.concatenate(
        [
            np.concatenate([np.ones((F, 1)), C, hat_C], axis=1),
            np.concatenate([np.zeros((2, 3)), C.T], axis=1),
            np.concatenate([np.zeros((1, 3)), np.ones((1, F))], axis=1),
        ],
        axis=0,
    )                                                                          # (F+3, F+3)
    # TODO(synk): torch.inverse has no in-kernel Pallas equivalent; it is a
    # data-independent constant, so it is computed host-side in float64 numpy.
    inv_delta_C = np.linalg.inv(delta_C)

    # build_P_hat_paddle
    n = P.shape[0]
    P_diff = P[:, None, :] - C[None, :, :]                                     # (n, F, 2)
    rbf_norm = np.linalg.norm(P_diff, axis=2)                                  # (n, F)
    rbf = (rbf_norm ** 2) * np.log(rbf_norm + eps)
    P_hat = np.concatenate([np.ones((n, 1)), P, rbf], axis=1)                  # (n, F+3)

    # Fused constant: P_hat @ (inv_delta_C @ cpw) == (P_hat @ inv_delta_C) @ cpw.
    M = P_hat @ inv_delta_C                                                    # (n, F+3) f64
    return (
        inv_delta_C.astype(np.float32),
        P_hat.astype(np.float32),
        np.ascontiguousarray(M.T).astype(np.float32),                          # (F+3, n)
    )


def _pick_lane_tile(n, cap=2048):
    """Single block when n is small; otherwise the largest 128-multiple divisor <= cap."""
    if n <= cap:
        return n
    for t in range(cap - (cap % 128), 0, -128):
        if n % t == 0:
            return t
    return n  # no clean divisor: fall back to one (big) block


def _grid_gen_kernel(cp_ref, w_ref, b_ref, mt_ref, out_ref):
    # cp_ref : (B, 2F)   f32   — flattened batch_C_prime
    # w_ref  : (2, 2F, F+3) f32 — per-coordinate "select + fc" map (built from fc_w)
    # b_ref  : (2, 1, F+3)  f32 — per-coordinate bias (from fc_b)
    # mt_ref : (F+3, tn) bf16  — lane tile of M^T = (P_hat @ inv_delta_C)^T
    # out_ref: (2, B, tn) f32  — lane-dense output, coord-major
    cp = cp_ref[...]
    mt = mt_ref[...].astype(jnp.float32)
    # lhs_c == cpw[:, :, c] == concat([C', ex], dim=1)[:, :, c]; the 6-wide fc,
    # the concat and the transpose are all absorbed into this single MXU matmul.
    lhs_x = jnp.dot(cp, w_ref[0], preferred_element_type=jnp.float32) + b_ref[0]
    lhs_y = jnp.dot(cp, w_ref[1], preferred_element_type=jnp.float32) + b_ref[1]
    out_ref[0] = jnp.dot(lhs_x, mt, preferred_element_type=jnp.float32)
    out_ref[1] = jnp.dot(lhs_y, mt, preferred_element_type=jnp.float32)


def grid_generator_forward(batch_C_prime, fc_w, fc_b, M_T, *, lane_dense_output=False):
    """batch_C_prime: (B, F, 2) f32; fc_w: (6, 2F); fc_b: (6,);
    M_T = (P_hat @ inv_delta_C)^T : (F+3, n), typically bfloat16.
    Returns batch_P_prime (B, n, 2) f32 (or lane-dense (B, 2, n) if requested)."""
    B, F, two = batch_C_prime.shape
    assert two == 2
    Fp3, n = M_T.shape
    assert Fp3 == F + 3

    f32 = jnp.float32
    cp_flat = batch_C_prime.reshape(B, 2 * F).astype(f32)   # free view under jit

    # Per-coordinate linear map so that  lhs_c = cp_flat @ W[c] + bias[c]  equals
    # torch.concat([batch_C_prime, get_expand_tensor(batch_C_prime)], 1)[:, :, c].
    eye = jnp.eye(F, dtype=f32)
    sel = jnp.zeros((2, 2 * F, F), f32)
    sel = sel.at[0, 0::2, :].set(eye)                        # selects C'[b, i, 0]
    sel = sel.at[1, 1::2, :].set(eye)                        # selects C'[b, i, 1]
    fc_part = jnp.stack([fc_w[0::2, :].T, fc_w[1::2, :].T], axis=0).astype(f32)  # (2, 2F, 3)
    W = jnp.concatenate([sel, fc_part], axis=2)                                  # (2, 2F, F+3)
    bias = jnp.concatenate(
        [jnp.zeros((2, 1, F), f32),
         jnp.stack([fc_b[0::2], fc_b[1::2]], axis=0)[:, None, :].astype(f32)],
        axis=2,
    )                                                                            # (2, 1, F+3)

    tn = _pick_lane_tile(n)
    num_tiles = n // tn
    # Only megacore-shard when each core gets a meaningful amount of lanes.
    sem = ("parallel",) if (num_tiles >= 2 and tn >= 512) else ("arbitrary",)

    cost = pl.CostEstimate(
        flops=2 * 2 * B * (2 * F) * Fp3 + 2 * 2 * B * Fp3 * n,
        transcendentals=0,
        bytes_accessed=(4 * B * 2 * F + 4 * 2 * 2 * F * Fp3 + 4 * 2 * Fp3
                        + M_T.dtype.itemsize * Fp3 * n + 4 * 2 * B * n),
    )

    out_t = pl.pallas_call(
        _grid_gen_kernel,
        out_shape=jax.ShapeDtypeStruct((2, B, n), jnp.float32),
        grid_spec=pltpu.PrefetchScalarGridSpec(
            num_scalar_prefetch=0,
            grid=(num_tiles,),
            in_specs=[
                pl.BlockSpec((B, 2 * F), lambda j: (0, 0)),        # cp_flat, resident
                pl.BlockSpec((2, 2 * F, Fp3), lambda j: (0, 0, 0)),  # W, resident
                pl.BlockSpec((2, 1, Fp3), lambda j: (0, 0, 0)),      # bias, resident
                pl.BlockSpec((Fp3, tn), lambda j: (0, j)),           # M^T lane tile
            ],
            out_specs=pl.BlockSpec((2, B, tn), lambda j: (0, 0, j)),
        ),
        compiler_params=pltpu.CompilerParams(dimension_semantics=sem),
        cost_estimate=cost,
    )(cp_flat, W, bias, M_T)

    if lane_dense_output:
        return out_t.transpose(1, 0, 2)       # (B, 2, n): stays lane-dense
    # PyTorch parity: batch_P_prime[b, p, c] == out_t[c, b, p]
    return out_t.transpose(1, 2, 0)           # (B, n, 2)


if __name__ == "__main__":
    B = 2
    num_fiducial = 20                 # F
    in_channels = 2 * num_fiducial    # fc input dim (F * 2)
    I_r_size = (16, 16)               # (I_r_height, I_r_width) -> n = 256

    key = jax.random.PRNGKey(0)
    k1, k2, k3 = jax.random.split(key, 3)
    # Deterministic synthetic parameters of nn.Linear(in_channels, 6)
    fc_w = jax.random.normal(k1, (6, in_channels), jnp.float32) * 0.05
    fc_b = jax.random.normal(k2, (6,), jnp.float32) * 0.05
    # Input: predicted fiducial points C' in [-1, 1]
    batch_C_prime = jax.random.uniform(k3, (B, num_fiducial, 2), jnp.float32, -1.0, 1.0)

    inv_delta_C_np, P_hat_np, M_T_np = build_constants(num_fiducial, I_r_size)
    # Dominant-bytes operand stored in bf16 (per perf review); kernel accumulates in f32.
    M_T = jnp.asarray(M_T_np, dtype=jnp.bfloat16)

    fwd = jax.jit(grid_generator_forward)
    out = jax.block_until_ready(fwd(batch_C_prime, fc_w, fc_b, M_T))

    # --- references ---------------------------------------------------------
    hi = jax.lax.Precision.HIGHEST
    ex = (batch_C_prime.reshape(B, -1) @ fc_w.T + fc_b).reshape(B, 3, 2)
    cpw = jnp.concatenate([batch_C_prime, ex], axis=1)                        # (B, F+3, 2)

    # (1) unfused f32 PyTorch math (f32 constants, high-precision matmuls)
    inv_delta_C = jnp.asarray(inv_delta_C_np)
    P_hat = jnp.asarray(P_hat_np)
    batch_T = jnp.einsum("fg,bgc->bfc", inv_delta_C, cpw, precision=hi)       # (B, F+3, 2)
    ref_f32 = jnp.einsum("nf,bfc->bnc", P_hat, batch_T, precision=hi)         # (B, n, 2)

    # (2) same math with the bf16-quantized fused M (isolates kernel correctness
    #     from the sanctioned bf16 storage of M_T)
    M_q = M_T.astype(jnp.float32).T                                           # (n, F+3)
    ref_q = jnp.einsum("nf,bfc->bnc", M_q, cpw, precision=hi)                 # (B, n, 2)

    n = I_r_size[0] * I_r_size[1]
    assert out.shape == (B, n, 2), out.shape
    assert out.dtype == jnp.float32
    err_kernel = float(jnp.max(jnp.abs(out - ref_q)))
    err_full = float(jnp.max(jnp.abs(out - ref_f32)))
    assert err_kernel < 5e-3, f"kernel-vs-quantized-ref max abs error {err_kernel}"
    assert err_full < 5e-2, f"kernel-vs-f32-ref max abs error {err_full}"
    print("KERNEL_OK")
</pallas_src>

<mosaic_0001>
module attributes {stable_mosaic.version = 11 : i64} {
  func.func @_grid_gen_kernel(%arg0: i32, %arg1: memref<2x40xf32, #tpu.memory_space<vmem>>, %arg2: memref<2x40x23xf32, #tpu.memory_space<vmem>>, %arg3: memref<2x1x23xf32, #tpu.memory_space<vmem>>, %arg4: memref<23x256xbf16, #tpu.memory_space<vmem>>, %arg5: memref<2x2x256xf32, #tpu.memory_space<vmem>>) attributes {dimension_semantics = [#tpu.dimension_semantics<arbitrary>], iteration_bounds = array<i64: 1>, scalar_prefetch = 0 : i64, scratch_operands = 0 : i64, tpu.core_type = #tpu.core_type<tc>, window_params = [{pipeline_mode = #tpu.pipeline_mode<synchronous>, transform_indices = @transform_0, window_bounds = array<i64: 2, 40>}, {pipeline_mode = #tpu.pipeline_mode<synchronous>, transform_indices = @transform_1, window_bounds = array<i64: 2, 40, 23>}, {pipeline_mode = #tpu.pipeline_mode<synchronous>, transform_indices = @transform_2, window_bounds = array<i64: 2, 1, 23>}, {transform_indices = @transform_3, window_bounds = array<i64: 23, 256>}, {transform_indices = @transform_4, window_bounds = array<i64: 2, 2, 256>}]} {
    %c0 = arith.constant 0 : index
    %c0_0 = arith.constant 0 : index
    %0 = vector.load %arg1[%c0, %c0_0] : memref<2x40xf32, #tpu.memory_space<vmem>>, vector<2x40xf32>
    %c0_1 = arith.constant 0 : index
    %c0_2 = arith.constant 0 : index
    %1 = vector.load %arg4[%c0_1, %c0_2] : memref<23x256xbf16, #tpu.memory_space<vmem>>, vector<23x256xbf16>
    %2 = arith.extf %1 : vector<23x256xbf16> to vector<23x256xf32>
    %c0_3 = arith.constant 0 : index
    %c0_4 = arith.constant 0 : index
    %c0_5 = arith.constant 0 : index
    %3 = vector.load %arg2[%c0_3, %c0_4, %c0_5] : memref<2x40x23xf32, #tpu.memory_space<vmem>>, vector<1x40x23xf32>
    %4 = vector.shape_cast %3 : vector<1x40x23xf32> to vector<40x23xf32>
    %cst = arith.constant dense<0.000000e+00> : vector<2x23xf32>
    %5 = tpu.matmul %0, %4, %cst {dimension_numbers = #tpu.dot_dimension_numbers<[1], [0], [0], [1], [0, 0, 1, 1], [], []>} : vector<2x40xf32>, vector<40x23xf32>, vector<2x23xf32> -> vector<2x23xf32>
    %c0_6 = arith.constant 0 : index
    %c0_7 = arith.constant 0 : index
    %c0_8 = arith.constant 0 : index
    %6 = vector.load %arg3[%c0_6, %c0_7, %c0_8] : memref<2x1x23xf32, #tpu.memory_space<vmem>>, vector<1x1x23xf32>
    %7 = vector.shape_cast %6 : vector<1x1x23xf32> to vector<1x23xf32>
    %8 = vector.broadcast %7 : vector<1x23xf32> to vector<2x23xf32>
    %9 = arith.addf %5, %8 : vector<2x23xf32>
    %c1 = arith.constant 1 : index
    %c0_9 = arith.constant 0 : index
    %c0_10 = arith.constant 0 : index
    %10 = vector.load %arg2[%c1, %c0_9, %c0_10] : memref<2x40x23xf32, #tpu.memory_space<vmem>>, vector<1x40x23xf32>
    %11 = vector.shape_cast %10 : vector<1x40x23xf32> to vector<40x23xf32>
    %cst_11 = arith.constant dense<0.000000e+00> : vector<2x23xf32>
    %12 = tpu.matmul %0, %11, %cst_11 {dimension_numbers = #tpu.dot_dimension_numbers<[1], [0], [0], [1], [0, 0, 1, 1], [], []>} : vector<2x40xf32>, vector<40x23xf32>, vector<2x23xf32> -> vector<2x23xf32>
    %c1_12 = arith.constant 1 : index
    %c0_13 = arith.constant 0 : index
    %c0_14 = arith.constant 0 : index
    %13 = vector.load %arg3[%c1_12, %c0_13, %c0_14] : memref<2x1x23xf32, #tpu.memory_space<vmem>>, vector<1x1x23xf32>
    %14 = vector.shape_cast %13 : vector<1x1x23xf32> to vector<1x23xf32>
    %15 = vector.broadcast %14 : vector<1x23xf32> to vector<2x23xf32>
    %16 = arith.addf %12, %15 : vector<2x23xf32>
    %cst_15 = arith.constant dense<0.000000e+00> : vector<2x256xf32>
    %17 = tpu.matmul %9, %2, %cst_15 {dimension_numbers = #tpu.dot_dimension_numbers<[1], [0], [0], [1], [0, 0, 1, 1], [], []>} : vector<2x23xf32>, vector<23x256xf32>, vector<2x256xf32> -> vector<2x256xf32>
    %c0_16 = arith.constant 0 : index
    %c0_17 = arith.constant 0 : index
    %c0_18 = arith.constant 0 : index
    %18 = vector.load %arg5[%c0_16, %c0_17, %c0_18] : memref<2x2x256xf32, #tpu.memory_space<vmem>>, vector<1x2x256xf32>
    %19 = vector.shape_cast %18 : vector<1x2x256xf32> to vector<2x256xf32>
    %20 = vector.shape_cast %17 : vector<2x256xf32> to vector<1x2x256xf32>
    tpu.vector_store %arg5[%c0_16, %c0_17, %c0_18], %20 {strides = array<i32>} : memref<2x2x256xf32, #tpu.memory_space<vmem>>, vector<1x2x256xf32>,
    %cst_19 = arith.constant dense<0.000000e+00> : vector<2x256xf32>
    %21 = tpu.matmul %16, %2, %cst_19 {dimension_numbers = #tpu.dot_dimension_numbers<[1], [0], [0], [1], [0, 0, 1, 1], [], []>} : vector<2x23xf32>, vector<23x256xf32>, vector<2x256xf32> -> vector<2x256xf32>
    %c1_20 = arith.constant 1 : index
    %c0_21 = arith.constant 0 : index
    %c0_22 = arith.constant 0 : index
    %22 = vector.load %arg5[%c1_20, %c0_21, %c0_22] : memref<2x2x256xf32, #tpu.memory_space<vmem>>, vector<1x2x256xf32>
    %23 = vector.shape_cast %22 : vector<1x2x256xf32> to vector<2x256xf32>
    %24 = vector.shape_cast %21 : vector<2x256xf32> to vector<1x2x256xf32>
    tpu.vector_store %arg5[%c1_20, %c0_21, %c0_22], %24 {strides = array<i32>} : memref<2x2x256xf32, #tpu.memory_space<vmem>>, vector<1x2x256xf32>,
    return
  }
  func.func @transform_0(%arg0: i32) -> (i32, i32) {
    %c0_i32 = arith.constant 0 : i32
    %c0_i32_0 = arith.constant 0 : i32
    %c0_i32_1 = arith.constant 0 : i32
    return %c0_i32, %c0_i32_0 : i32, i32
  }
  func.func @transform_1(%arg0: i32) -> (i32, i32, i32) {
    %c0_i32 = arith.constant 0 : i32
    %c0_i32_0 = arith.constant 0 : i32
    %c0_i32_1 = arith.constant 0 : i32
    %c0_i32_2 = arith.constant 0 : i32
    return %c0_i32, %c0_i32_0, %c0_i32_1 : i32, i32, i32
  }
  func.func @transform_2(%arg0: i32) -> (i32, i32, i32) {
    %c0_i32 = arith.constant 0 : i32
    %c0_i32_0 = arith.constant 0 : i32
    %c0_i32_1 = arith.constant 0 : i32
    %c0_i32_2 = arith.constant 0 : i32
    return %c0_i32, %c0_i32_0, %c0_i32_1 : i32, i32, i32
  }
  func.func @transform_3(%arg0: i32) -> (i32, i32) {
    %c0_i32 = arith.constant 0 : i32
    %c0_i32_0 = arith.constant 0 : i32
    return %c0_i32, %arg0 : i32, i32
  }
  func.func @transform_4(%arg0: i32) -> (i32, i32, i32) {
    %c0_i32 = arith.constant 0 : i32
    %c0_i32_0 = arith.constant 0 : i32
    %c0_i32_1 = arith.constant 0 : i32
    return %c0_i32, %c0_i32_0, %arg0 : i32, i32, i32
  }
}

</mosaic_0001>

<llo_original>
// kernel: grid_generator_forward.1
$region0: #{grid_generator_forward.1}
  #allocation0 [shape = 'u32[]', space=smem, size = 0x4, offset = 0x4, fixed_abs, tag = 'smem constant byte address 0x4 - core index']
  #allocation1 [shape = 'u32[72,128]{1,0:T(1,128)}', space=vmem, size = 0x9000, scoped, tag = 'internal scratch']
  %s0 = inlined_call_operand.vmem [shape: f32[2,40], index: 0, kind: input, shape index: {}]
  %s1 = inlined_call_operand.vmem [shape: f32[2,40,23], index: 1, kind: input, shape index: {}]
  %s2 = inlined_call_operand.vmem [shape: f32[2,1,23], index: 2, kind: input, shape index: {}]
  %s3 = inlined_call_operand.vmem [shape: bf16[23,256], index: 3, kind: input, shape index: {}]
  %s4 = inlined_call_operand.vmem [shape: f32[2,2,256], index: 4, kind: output, shape index: {}]
  %s5 = sld [smem:[#allocation0]]
  $region26: #{grid_generator_forward.1} parent=0
    _
  %s7 = ssub.s32 1, %s5
  %s8 = scalar_select 0, %s7, %s5
  // Predicated region
  $region2: #{grid_generator_forward.1} parent=0 // pred_check
    _
  $region3: #{grid_generator_forward.1} parent=0 // pred_check_branch
    %10 = sbr.rel (0) target = $region5
  $region4: #{grid_generator_forward.1} parent=0 // pred_region
    _
  $region5: #{grid_generator_forward.1} parent=0 // pred_fallthru
    _
  // Predicated region
  $region6: #{grid_generator_forward.1} parent=0 // pred_check
    _
  $region7: #{grid_generator_forward.1} parent=0 // pred_check_branch
    %12 = sbr.rel (0) target = $region9
  $region8: #{grid_generator_forward.1} parent=0 // pred_region
    _
  $region9: #{grid_generator_forward.1} parent=0 // pred_fallthru
    _
  // Predicated region
  $region10: #{grid_generator_forward.1} parent=0 // pred_check
    _
  $region11: #{grid_generator_forward.1} parent=0 // pred_check_branch
    %14 = sbr.rel (0) target = $region13
  $region12: #{grid_generator_forward.1} parent=0 // pred_region
    _
  $region13: #{grid_generator_forward.1} parent=0 // pred_fallthru
    _
  // Predicated region
  $region14: #{grid_generator_forward.1} parent=0 // pred_check
    _
  $region15: #{grid_generator_forward.1} parent=0 // pred_check_branch
    %16 = sbr.rel (0) target = $region17
  $region16: #{grid_generator_forward.1} parent=0 // pred_region
    _
  $region17: #{grid_generator_forward.1} parent=0 // pred_fallthru
    _
  %v17 = vld [vmem:[%s0] sm:$0x3]
  %v18 = vld [vmem:[%s3] sm:$0xff]
  %v19 = vld [vmem:[%s3 + $0x8] sm:$0xff]
  %v20 = vld [vmem:[%s3 + $0x10] sm:$0xff]
  %v21 = vunpack.c.l.bf16 %v18
  %v22 = vunpack.c.h.bf16 %v18
  %v23 = vunpack.c.l.bf16 %v19
  %v24 = vunpack.c.h.bf16 %v19
  %v25 = vunpack.c.l.bf16 %v20
  %v26 = vunpack.c.h.bf16 %v20
  %v27 = vld [vmem:[%s1] sm:$0xff]
  %v28 = vld [vmem:[%s1 + $0x8] sm:$0xff]
  %v29 = vld [vmem:[%s1 + $0x10] sm:$0xff]
  %v30 = vld [vmem:[%s1 + $0x18] sm:$0xff]
  %v31 = vld [vmem:[%s1 + $0x20] sm:$0xff]
  %v32 = vld [vmem:[%s2] sm:$0x1]
  %v34 = vperm.slane %v32, 0
  %vm36 = vcmask 326656
  %v38 = vsel %vm36, %v17, 0
  %40 = vmatpush.msra.mxu0 0.0
  %41 = vmatpush.msra.mxu0 0.0
  %42 = vmatpush.msra.mxu0 0.0
  %43 = vmatpush.msra.mxu0 0.0
  %44 = vmatpush.msra.mxu0 0.0
  %45 = vmatpush.msra.mxu0 0.0
  %46 = vmatpush.msra.mxu0 0.0
  %47 = vmatpush.msra.mxu0 0.0
  %48 = vmatpush.msra.mxu0 0.0
  %49 = vmatpush.msra.mxu0 0.0
  %50 = vmatpush.msra.mxu0 0.0
  %51 = vmatpush.msra.mxu0 %v31
  %52 = vmatpush.msra.mxu0 %v30
  %53 = vmatpush.msra.mxu0 %v29
  %54 = vmatpush.msra.mxu0 %v28
  %55 = vmatpush.msra.mxu0 %v27
  %56 = vmatmul.f32.gmra.mxu0 %v38
  %v57 = vpop.f32.mrf.mxu0
  %v58 = vadd.f32 %v34, %v57
  %59 = vdwg.mxu0
  %s60 = scalar_lea.vmem %s1, 40
  %v61 = vld [vmem:[%s60] sm:$0xff]
  %v62 = vld [vmem:[%s60 + $0x8] sm:$0xff]
  %v63 = vld [vmem:[%s60 + $0x10] sm:$0xff]
  %v64 = vld [vmem:[%s60 + $0x18] sm:$0xff]
  %v65 = vld [vmem:[%s60 + $0x20] sm:$0xff]
  %s66 = scalar_lea.vmem %s2, 1
  %v67 = vld [vmem:[%s66] sm:$0x1]
  %v69 = vperm.slane %v67, 0
  %71 = vmatpush.msra.mxu0 0.0
  %72 = vmatpush.msra.mxu0 0.0
  %73 = vmatpush.msra.mxu0 0.0
  %74 = vmatpush.msra.mxu0 0.0
  %75 = vmatpush.msra.mxu0 0.0
  %76 = vmatpush.msra.mxu0 0.0
  %77 = vmatpush.msra.mxu0 0.0
  %78 = vmatpush.msra.mxu0 0.0
  %79 = vmatpush.msra.mxu0 0.0
  %80 = vmatpush.msra.mxu0 0.0
  %81 = vmatpush.msra.mxu0 0.0
  %82 = vmatpush.msra.mxu0 %v65
  %83 = vmatpush.msra.mxu0 %v64
  %84 = vmatpush.msra.mxu0 %v63
  %85 = vmatpush.msra.mxu0 %v62
  %86 = vmatpush.msra.mxu0 %v61
  %87 = vmatmul.f32.gmra.mxu0 %v38
  %v88 = vpop.f32.mrf.mxu0
  %v89 = vadd.f32 %v69, %v88
  %90 = vdwg.mxu0
  %vm91 = vcmask 187392
  %v93 = vsel %vm91, %v58, 0
  %vm95 = vcmask 1046528
  %v97 = vsel %vm95, %v25, 0
  %v100 = vsel %vm95, %v26, 0
  %102 = vmatpush.msra.mxu0 0.0
  %103 = vmatpush.msra.mxu0 0.0
  %104 = vmatpush.msra.mxu0 0.0
  %105 = vmatpush.msra.mxu0 0.0
  %106 = vmatpush.msra.mxu0 0.0
  %107 = vmatpush.msra.mxu0 0.0
  %108 = vmatpush.msra.mxu0 0.0
  %109 = vmatpush.msra.mxu0 0.0
  %110 = vmatpush.msra.mxu0 0.0
  %111 = vmatpush.msra.mxu0 0.0
  %112 = vmatpush.msra.mxu0 0.0
  %113 = vmatpush.msra.mxu0 0.0
  %114 = vmatpush.msra.mxu0 0.0
  %115 = vmatpush.msra.mxu0 %v97
  %116 = vmatpush.msra.mxu0 %v23
  %117 = vmatpush.msra.mxu0 %v21
  %118 = vmatmul.f32.gmra.mxu0 %v93
  %v119 = vpop.f32.mrf.mxu0
  %v120 = vadd.f32 0.0, %v119
  %121 = vdwg.mxu0
  %122 = vmatpush.msra.mxu0 0.0
  %123 = vmatpush.msra.mxu0 0.0
  %124 = vmatpush.msra.mxu0 0.0
  %125 = vmatpush.msra.mxu0 0.0
  %126 = vmatpush.msra.mxu0 0.0
  %127 = vmatpush.msra.mxu0 0.0
  %128 = vmatpush.msra.mxu0 0.0
  %129 = vmatpush.msra.mxu0 0.0
  %130 = vmatpush.msra.mxu0 0.0
  %131 = vmatpush.msra.mxu0 0.0
  %132 = vmatpush.msra.mxu0 0.0
  %133 = vmatpush.msra.mxu0 0.0
  %134 = vmatpush.msra.mxu0 0.0
  %135 = vmatpush.msra.mxu0 %v100
  %136 = vmatpush.msra.mxu0 %v24
  %137 = vmatpush.msra.mxu0 %v22
  %138 = vmatmul.f32.gmra.mxu0 %v93
  %v139 = vpop.f32.mrf.mxu0
  %v140 = vadd.f32 0.0, %v139
  %141 = vdwg.mxu0
  %v144 = vrot.slane %v140, 6
  %vm145 = vcmask 1041408
  %v146 = vsel %vm145, %v120, %v144
  %148 = vst [vmem:[%s4] sm:$0xf] %v146
  %v150 = vsel %vm91, %v89, 0
  %152 = vmatpush.msra.mxu0 0.0
  %153 = vmatpush.msra.mxu0 0.0
  %154 = vmatpush.msra.mxu0 0.0
  %155 = vmatpush.msra.mxu0 0.0
  %156 = vmatpush.msra.mxu0 0.0
  %157 = vmatpush.msra.mxu0 0.0
  %158 = vmatpush.msra.mxu0 0.0
  %159 = vmatpush.msra.mxu0 0.0
  %160 = vmatpush.msra.mxu0 0.0
  %161 = vmatpush.msra.mxu0 0.0
  %162 = vmatpush.msra.mxu0 0.0
  %163 = vmatpush.msra.mxu0 0.0
  %164 = vmatpush.msra.mxu0 0.0
  %165 = vmatpush.msra.mxu0 %v97
  %166 = vmatpush.msra.mxu0 %v23
  %167 = vmatpush.msra.mxu0 %v21
  %168 = vmatmul.f32.gmra.mxu0 %v150
  %v169 = vpop.f32.mrf.mxu0
  %v170 = vadd.f32 0.0, %v169
  %171 = vdwg.mxu0
  %172 = vmatpush.msra.mxu0 0.0
  %173 = vmatpush.msra.mxu0 0.0
  %174 = vmatpush.msra.mxu0 0.0
  %175 = vmatpush.msra.mxu0 0.0
  %176 = vmatpush.msra.mxu0 0.0
  %177 = vmatpush.msra.mxu0 0.0
  %178 = vmatpush.msra.mxu0 0.0
  %179 = vmatpush.msra.mxu0 0.0
  %180 = vmatpush.msra.mxu0 0.0
  %181 = vmatpush.msra.mxu0 0.0
  %182 = vmatpush.msra.mxu0 0.0
  %183 = vmatpush.msra.mxu0 0.0
  %184 = vmatpush.msra.mxu0 0.0
  %185 = vmatpush.msra.mxu0 %v100
  %186 = vmatpush.msra.mxu0 %v24
  %187 = vmatpush.msra.mxu0 %v22
  %188 = vmatmul.f32.gmra.mxu0 %v150
  %v189 = vpop.f32.mrf.mxu0
  %v190 = vadd.f32 0.0, %v189
  %191 = vdwg.mxu0
  %v194 = vrot.slane %v190, 6
  %v195 = vsel %vm145, %v170, %v194
  %s197 = scalar_lea.vmem %s4, 4
  %198 = vst [vmem:[%s197] sm:$0xf] %v195
  // Predicated region
  $region18: #{grid_generator_forward.1} parent=0 // pred_check
    _
  $region19: #{grid_generator_forward.1} parent=0 // pred_check_branch
    %200 = sbr.rel (0) target = $region21
  $region20: #{grid_generator_forward.1} parent=0 // pred_region
    _
  $region21: #{grid_generator_forward.1} parent=0 // pred_fallthru
    _
  // Predicated region
  $region22: #{grid_generator_forward.1} parent=0 // pred_check
    _
  $region23: #{grid_generator_forward.1} parent=0 // pred_check_branch
    %202 = sbr.rel (0) target = $region25
  $region24: #{grid_generator_forward.1} parent=0 // pred_region
    _
  $region25: #{grid_generator_forward.1} parent=0 // pred_fallthru
    _

</llo_original>
